<compile_context>
chip_gen: v5e
topology: v5e:2x2
jax: 0.10.0
libtpu: 0.0.40
codegen_flags: <defaults>
</compile_context>

<pallas_src>
import jax
import jax.numpy as jnp
from jax import lax
from jax.experimental import pallas as pl
from jax.experimental.pallas import tpu as pltpu


def _round_up(v, m):
    return (v + m - 1) // m * m


def _mlp_proj_kernel(x_ref, w_ref, b_ref, o_ref):
    # x_ref: (C, tn)  channels-first tile (NCHW transpose fused via transposed-LHS matmul)
    # w_ref: (C, E)   resident weight (constant index_map -> DMA'd once)
    # b_ref: (1, E)   f32 bias
    # o_ref: (tn, E)  lane-dense output tile
    x = x_ref[...]
    if x.dtype != w_ref.dtype:
        # In-kernel cast to the compute dtype: avoids a separate wrapper-side
        # astype pass over x in HBM (kernel is output-write bound anyway).
        x = x.astype(w_ref.dtype)
    # TODO(synk): inspect the Mosaic bundle for a per-tile XLU transpose of the
    # (C, tn) LHS; if it shows on v7x (less memory slack), try
    # pl.dot(x, w, trans_a=True) or a one-shot einshape into a (tn, C) scratch.
    acc = lax.dot_general(
        x, w_ref[...],
        dimension_numbers=(((0,), (0,)), ((), ())),   # contract over C
        preferred_element_type=jnp.float32,
    )
    o_ref[...] = (acc + b_ref[...]).astype(o_ref.dtype)


def mlp_forward(x, weight, bias, *, tn=1024, compute_dtype=None,
                out_dtype=None, vmem_limit_bytes=None):
    """SegFormer MLP forward.

    x:      (B, C, H, W) NCHW, same as the PyTorch module.
    weight: (E, C)       torch nn.Linear layout.
    bias:   (E,)
    tn:            N-tile width (lane axis, rounded to a multiple of 128).
                   1024 is right for v5e/v6e; use 2048 on v7x (bump
                   vmem_limit_bytes if running f32 with large E on v5e).
    compute_dtype: e.g. jnp.bfloat16 -> MXU runs bf16 (f32 accumulation); the
                   x tile is cast in-kernel, only the tiny weight in the wrapper.
    out_dtype:     output dtype (default x.dtype). Pass bf16 when downstream
                   allows: the (N, E) writeback dominates HBM traffic.
    returns (B, H*W, E), matching MLP.forward.
    """
    B, C, H, W = x.shape
    E = weight.shape[0]
    N = H * W
    out_dtype = x.dtype if out_dtype is None else out_dtype

    # Fused transpose: keep channels-first (B, C, N). Pure metadata reshape,
    # no extra HBM traffic on x.
    x_cn = x.reshape(B, C, N)

    if compute_dtype is not None:
        weight = weight.astype(compute_dtype)        # tiny; x is cast in-kernel
    w_t = jnp.transpose(weight)                      # (C, E), stays resident
    b2 = bias.astype(jnp.float32).reshape(1, E)      # f32 bias add in epilogue

    # Tile N on the lane axis with large lane-dense tiles (multiple of 128),
    # capped to the 128-rounded sequence length. Ragged N is handled by
    # Pallas' masked boundary block (no wrapper pad / slice passes over HBM).
    tn_eff = max(128, min(_round_up(tn, 128), _round_up(N, 128)))
    n_tiles = pl.cdiv(N, tn_eff)
    # TODO(synk): on v7x (2 TCs) a (1, 1) grid (B==1, small N) leaves one core
    # idle; add a parallel E-split grid axis for that corner if it matters.
    grid = (B, n_tiles)

    in_bytes = jnp.dtype(x.dtype).itemsize
    out_bytes = jnp.dtype(out_dtype).itemsize
    cost = pl.CostEstimate(
        flops=2 * B * N * C * E,
        transcendentals=0,
        bytes_accessed=(B * N * (C * in_bytes + E * out_bytes)
                        + C * E * jnp.dtype(w_t.dtype).itemsize + E * 4),
    )

    compiler_kwargs = dict(dimension_semantics=("parallel", "parallel"))
    if vmem_limit_bytes is not None:
        compiler_kwargs["vmem_limit_bytes"] = vmem_limit_bytes

    out = pl.pallas_call(
        _mlp_proj_kernel,
        out_shape=jax.ShapeDtypeStruct((B, N, E), out_dtype),
        grid_spec=pltpu.PrefetchScalarGridSpec(
            num_scalar_prefetch=0,
            grid=grid,
            in_specs=[
                # x tile: (C, tn) with N on the lane axis (lane-dense, mult of 128)
                pl.BlockSpec((None, C, tn_eff), lambda b, j: (b, 0, j)),
                # full weight, constant index_map -> DMA'd once, cached in VMEM
                pl.BlockSpec((C, E), lambda b, j: (0, 0)),
                # bias
                pl.BlockSpec((1, E), lambda b, j: (0, 0)),
            ],
            out_specs=pl.BlockSpec((None, tn_eff, E), lambda b, j: (b, j, 0)),
        ),
        compiler_params=pltpu.CompilerParams(**compiler_kwargs),
        cost_estimate=cost,
    )(x_cn, w_t, b2)
    return out


if __name__ == "__main__":
    # Small demo shapes: batch=2, dim (channels)=4, spatial=16x16, embed_dim=32
    B, C, H, W = 2, 4, 16, 16
    E = 32

    key = jax.random.PRNGKey(0)
    kx, kw, kb = jax.random.split(key, 3)

    x = jax.random.normal(kx, (B, C, H, W), dtype=jnp.float32)
    # Deterministic init mimicking nn.Linear's uniform(-1/sqrt(C), 1/sqrt(C))
    bound = 1.0 / (C ** 0.5)
    weight = jax.random.uniform(kw, (E, C), minval=-bound, maxval=bound,
                                dtype=jnp.float32)
    bias = jax.random.uniform(kb, (E,), minval=-bound, maxval=bound,
                              dtype=jnp.float32)

    out = mlp_forward(x, weight, bias)
    out = jax.block_until_ready(out)

    # Reference (same math as the PyTorch module)
    x_seq_ref = jnp.transpose(x.reshape(B, C, H * W), (0, 2, 1))
    ref = jnp.einsum("bnc,ec->bne", x_seq_ref, weight) + bias
    assert out.shape == (B, H * W, E)
    assert jnp.allclose(out, ref, atol=1e-5, rtol=1e-5)

    # Ragged N (13x13=169, not a multiple of 128): exercises the masked
    # boundary block (no wrapper pad / slice).
    B2, C2, H2, W2, E2 = 1, 8, 13, 13, 48
    k2x, k2w, k2b = jax.random.split(jax.random.PRNGKey(1), 3)
    x2 = jax.random.normal(k2x, (B2, C2, H2, W2), dtype=jnp.float32)
    w2 = jax.random.normal(k2w, (E2, C2), dtype=jnp.float32) * 0.1
    b2v = jax.random.normal(k2b, (E2,), dtype=jnp.float32) * 0.1
    out2 = jax.block_until_ready(mlp_forward(x2, w2, b2v))
    ref2 = jnp.einsum(
        "bnc,ec->bne",
        jnp.transpose(x2.reshape(B2, C2, H2 * W2), (0, 2, 1)), w2) + b2v
    assert out2.shape == (B2, H2 * W2, E2)
    assert jnp.allclose(out2, ref2, atol=1e-4, rtol=1e-4)

    # bf16 compute + bf16 output path (v6e/v7x style): in-kernel cast of x,
    # halved output writeback. Loose tolerances are expected bf16 rounding.
    out3 = jax.block_until_ready(
        mlp_forward(x, weight, bias,
                    compute_dtype=jnp.bfloat16, out_dtype=jnp.bfloat16))
    assert out3.shape == (B, H * W, E) and out3.dtype == jnp.bfloat16
    assert jnp.allclose(out3.astype(jnp.float32), ref, atol=1e-1, rtol=1e-1)

    print("KERNEL_OK")
</pallas_src>

<mosaic_0001>
module attributes {stable_mosaic.version = 11 : i64} {
  func.func @_mlp_proj_kernel(%arg0: i32, %arg1: i32, %arg2: memref<1x4x256xf32, #tpu.memory_space<vmem>>, %arg3: memref<4x32xf32, #tpu.memory_space<vmem>>, %arg4: memref<1x32xf32, #tpu.memory_space<vmem>>, %arg5: memref<1x256x32xf32, #tpu.memory_space<vmem>>) attributes {dimension_semantics = [#tpu.dimension_semantics<parallel>, #tpu.dimension_semantics<parallel>], iteration_bounds = array<i64: 2, 1>, scalar_prefetch = 0 : i64, scratch_operands = 0 : i64, tpu.core_type = #tpu.core_type<tc>, window_params = [{transform_indices = @transform_0, window_bounds = array<i64: 1, 4, 256>}, {pipeline_mode = #tpu.pipeline_mode<synchronous>, transform_indices = @transform_1, window_bounds = array<i64: 4, 32>}, {pipeline_mode = #tpu.pipeline_mode<synchronous>, transform_indices = @transform_2, window_bounds = array<i64: 1, 32>}, {transform_indices = @transform_3, window_bounds = array<i64: 1, 256, 32>}]} {
    %c0 = arith.constant 0 : index
    %c0_0 = arith.constant 0 : index
    %c0_1 = arith.constant 0 : index
    %0 = vector.load %arg2[%c0, %c0_0, %c0_1] : memref<1x4x256xf32, #tpu.memory_space<vmem>>, vector<1x4x256xf32>
    %1 = vector.shape_cast %0 : vector<1x4x256xf32> to vector<4x256xf32>
    %c0_2 = arith.constant 0 : index
    %c0_3 = arith.constant 0 : index
    %2 = vector.load %arg3[%c0_2, %c0_3] : memref<4x32xf32, #tpu.memory_space<vmem>>, vector<4x32xf32>
    %cst = arith.constant dense<0.000000e+00> : vector<256x32xf32>
    %3 = tpu.matmul %1, %2, %cst {dimension_numbers = #tpu.dot_dimension_numbers<[0], [0], [1], [1], [0, 1, 1, 1], [], []>} : vector<4x256xf32>, vector<4x32xf32>, vector<256x32xf32> -> vector<256x32xf32>
    %c0_4 = arith.constant 0 : index
    %c0_5 = arith.constant 0 : index
    %4 = vector.load %arg4[%c0_4, %c0_5] : memref<1x32xf32, #tpu.memory_space<vmem>>, vector<1x32xf32>
    %5 = vector.broadcast %4 : vector<1x32xf32> to vector<256x32xf32>
    %6 = arith.addf %3, %5 : vector<256x32xf32>
    %c0_6 = arith.constant 0 : index
    %c0_7 = arith.constant 0 : index
    %c0_8 = arith.constant 0 : index
    %7 = vector.load %arg5[%c0_6, %c0_7, %c0_8] : memref<1x256x32xf32, #tpu.memory_space<vmem>>, vector<1x256x32xf32>
    %8 = vector.shape_cast %7 : vector<1x256x32xf32> to vector<256x32xf32>
    %9 = vector.shape_cast %6 : vector<256x32xf32> to vector<1x256x32xf32>
    tpu.vector_store %arg5[%c0_6, %c0_7, %c0_8], %9 {strides = array<i32>} : memref<1x256x32xf32, #tpu.memory_space<vmem>>, vector<1x256x32xf32>,
    return
  }
  func.func @transform_0(%arg0: i32, %arg1: i32) -> (i32, i32, i32) {
    %c0_i32 = arith.constant 0 : i32
    %c0_i32_0 = arith.constant 0 : i32
    return %arg0, %c0_i32, %arg1 : i32, i32, i32
  }
  func.func @transform_1(%arg0: i32, %arg1: i32) -> (i32, i32) {
    %c0_i32 = arith.constant 0 : i32
    %c0_i32_0 = arith.constant 0 : i32
    %c0_i32_1 = arith.constant 0 : i32
    return %c0_i32, %c0_i32_0 : i32, i32
  }
  func.func @transform_2(%arg0: i32, %arg1: i32) -> (i32, i32) {
    %c0_i32 = arith.constant 0 : i32
    %c0_i32_0 = arith.constant 0 : i32
    %c0_i32_1 = arith.constant 0 : i32
    return %c0_i32, %c0_i32_0 : i32, i32
  }
  func.func @transform_3(%arg0: i32, %arg1: i32) -> (i32, i32, i32) {
    %c0_i32 = arith.constant 0 : i32
    %c0_i32_0 = arith.constant 0 : i32
    return %arg0, %arg1, %c0_i32 : i32, i32, i32
  }
}

</mosaic_0001>

<llo_original>
// kernel: tpu_custom_call.1
$region0: #{tpu_custom_call.1}
  #allocation0 [shape = 'u32[]', space=smem, size = 0x4, offset = 0x4, fixed_abs, tag = 'smem constant byte address 0x4 - core index']
  #allocation1 [shape = 'u32[72,128]{1,0:T(1,128)}', space=vmem, size = 0x9000, scoped, tag = 'internal scratch']
  %s0 = inlined_call_operand.hbm [shape: f32[2,4,256], index: 0, kind: input, shape index: {}]
  %s1 = inlined_call_operand.hbm [shape: f32[4,32], index: 1, kind: input, shape index: {}]
  %s2 = inlined_call_operand.vmem [shape: f32[1,32], index: 2, kind: input, shape index: {}]
  %s3 = inlined_call_operand.vmem [shape: f32[2,256,32], index: 3, kind: output, shape index: {}]
  %s4 = sld [smem:[#allocation0]]
  $region53: #{tpu_custom_call.1} parent=0
    _
  %s6 = ssub.s32 1, %s4
  %s7 = scalar_select 0, %s6, %s4
  $region1: #{tpu_custom_call.1} parent=0
    #allocation2 [shape = 'u8[8192]{0}', space=vmem, size = 0x2000, scoped, tag = 'input window, operand 0']
    #allocation3 [shape = 's32[2]{0}', space=sflag, size = 0x8, scoped, tag = 'scoped memory for tpu_custom_call.1']
    #allocation4 [shape = 'u8[2048]{0}', space=vmem, size = 0x800, scoped, tag = 'input window, operand 1, single buffered']
    #allocation5 [shape = 's32[1]{0}', space=sflag, size = 0x4, scoped, tag = 'scoped memory for tpu_custom_call.1']
    %8 = vsyncpa [#allocation3], 0
    %s9 = scalar_lea.sflag [#allocation3], 1
    %10 = vsyncpa %s9, 0
    %11 = vsyncpa [#allocation5], 0
    loop: start=0, step=1, limit=4
    $region2: #{tpu_custom_call.1} parent=1 // loop_pre_header
      _
    $region3: #{tpu_custom_call.1} parent=1 // loop_header
      %s13 = sphi 0, %s17
      %p14 = scmp.ge.s32.totalorder %s13, 4
      %s20 = sphi 0, %s32
      %s21 = sphi 0, %s28
      %s22 = sphi 0, %s20
      %s23 = sphi 0, %s21
      %s24 = sphi 0, %s22
      %s25 = sphi 0, %s23
      %s37 = sphi 0, %s39
      %s40 = sphi 0, %s37
      %s41 = sphi 0, %s40
      %s57 = sphi 0, %s41
      %s61 = sphi 0, %s61
      %s63 = sphi 0, %s61
      %s64 = sphi 0, %s63
      %s78 = sphi 0, %s64
      %s82 = sphi 0, %s82
      %s84 = sphi 0, %s82
      %s85 = sphi 0, %s84
      %s99 = sphi 0, %s85
      %s107 = sphi 0, %s109
      %s110 = sphi 0, %s107
      %s111 = sphi 0, %s110
      %s127 = sphi 0, %s111
    $region4: #{tpu_custom_call.1} parent=1 // loop_header_branch
      %16 = sbr.rel (%p14) target = $region8
    $region5: #{tpu_custom_call.1} parent=1 // loop_body
      %s18 = ssub.s32 %s13, 1
      %s19 = ssub.s32 %s13, 2
      %s26 = sadd.s32 1, %s21
      %p27 = scmp.ge.s32.totalorder %s26, 1
      %s28 = scalar_select %p27, 0, %s26
      %s29 = sadd.s32 1, %s20
      %s30 = scalar_select %p27, %s29, %s20
      %p31 = scmp.ge.s32.totalorder %s30, 2
      %s32 = scalar_select %p31, 0, %s30
      %s33 = ssub.s32 %s20, %s32
      %s34 = ssub.s32 %s21, %s28
      %s35 = sor.u32 %s33, %s34
      %p36 = scmp.eq.s32.totalorder %s35, 0
      %s38 = sadd.s32 %s37, 1
      %s39 = scalar_select %p36, %s37, %s38
      %p42 = pneg %p36
      %p43 = scmp.eq.s32.totalorder %s13, 1
      %p44 = por %p42, %p43
      %p45 = scmp.ne.s32.totalorder %s37, %s40
      %p46 = scmp.eq.s32.totalorder %s13, 0
      %p47 = por %p45, %p46
      %p48 = scmp.ne.s32.totalorder %s37, %s40
      %p49 = scmp.eq.s32.totalorder %s18, 1
      %p50 = por %p48, %p49
      %p51 = scmp.ne.s32.totalorder %s40, %s41
      %p52 = scmp.eq.s32.totalorder %s18, 0
      %p53 = por %p51, %p52
      %p54 = scmp.ne.s32.totalorder %s40, %s41
      %p55 = scmp.eq.s32.totalorder %s19, 1
      %p56 = por %p54, %p55
      %p58 = scmp.ne.s32.totalorder %s41, %s57
      %p59 = scmp.eq.s32.totalorder %s19, 0
      %p60 = por %p58, %p59
      %s62 = sadd.s32 %s61, 1
      %p65 = scmp.eq.s32.totalorder %s13, 1
      %p66 = scmp.ne.s32.totalorder %s61, %s63
      %p67 = scmp.eq.s32.totalorder %s13, 0
      %p68 = por %p66, %p67
      %p69 = scmp.ne.s32.totalorder %s61, %s63
      %p70 = scmp.eq.s32.totalorder %s18, 1
      %p71 = por %p69, %p70
      %p72 = scmp.ne.s32.totalorder %s63, %s64
      %p73 = scmp.eq.s32.totalorder %s18, 0
      %p74 = por %p72, %p73
      %p75 = scmp.ne.s32.totalorder %s63, %s64
      %p76 = scmp.eq.s32.totalorder %s19, 1
      %p77 = por %p75, %p76
      %p79 = scmp.ne.s32.totalorder %s64, %s78
      %p80 = scmp.eq.s32.totalorder %s19, 0
      %p81 = por %p79, %p80
      %s83 = sadd.s32 %s82, 1
      %p86 = scmp.eq.s32.totalorder %s13, 1
      %p87 = scmp.ne.s32.totalorder %s82, %s84
      %p88 = scmp.eq.s32.totalorder %s13, 0
      %p89 = por %p87, %p88
      %p90 = scmp.ne.s32.totalorder %s82, %s84
      %p91 = scmp.eq.s32.totalorder %s18, 1
      %p92 = por %p90, %p91
      %p93 = scmp.ne.s32.totalorder %s84, %s85
      %p94 = scmp.eq.s32.totalorder %s18, 0
      %p95 = por %p93, %p94
      %p96 = scmp.ne.s32.totalorder %s84, %s85
      %p97 = scmp.eq.s32.totalorder %s19, 1
      %p98 = por %p96, %p97
      %p100 = scmp.ne.s32.totalorder %s85, %s99
      %p101 = scmp.eq.s32.totalorder %s19, 0
      %p102 = por %p100, %p101
      %s103 = ssub.s32 %s20, %s32
      %s104 = ssub.s32 %s21, %s28
      %s105 = sor.u32 %s103, %s104
      %p106 = scmp.eq.s32.totalorder %s105, 0
      %s108 = sadd.s32 %s107, 1
      %s109 = scalar_select %p106, %s107, %s108
      %p112 = pneg %p106
      %p113 = scmp.eq.s32.totalorder %s13, 1
      %p114 = por %p112, %p113
      %p115 = scmp.ne.s32.totalorder %s107, %s110
      %p116 = scmp.eq.s32.totalorder %s13, 0
      %p117 = por %p115, %p116
      %p118 = scmp.ne.s32.totalorder %s107, %s110
      %p119 = scmp.eq.s32.totalorder %s18, 1
      %p120 = por %p118, %p119
      %p121 = scmp.ne.s32.totalorder %s110, %s111
      %p122 = scmp.eq.s32.totalorder %s18, 0
      %p123 = por %p121, %p122
      %p124 = scmp.ne.s32.totalorder %s110, %s111
      %p125 = scmp.eq.s32.totalorder %s19, 1
      %p126 = por %p124, %p125
      %p128 = scmp.ne.s32.totalorder %s111, %s127
      %p129 = scmp.eq.s32.totalorder %s19, 0
      %p130 = por %p128, %p129
      %p131 = scmp.le.s32.totalorder 1, %s13
      %p132 = scmp.lt.s32.totalorder %s13, 3
      %p133 = pnand %p131, %p132
      %p134 = pneg %p133
      // Predicated region
      $region9: #{tpu_custom_call.1} parent=5 // pred_check
        _
      $region10: #{tpu_custom_call.1} parent=5 // pred_check_branch
        %136 = sbr.rel (%p133) target = $region12
      $region11: #{tpu_custom_call.1} parent=5 // pred_region
        %s137 = ssub.s32 %s13, 1
        // Predicated region
        $region13: #{tpu_custom_call.1} parent=11 // pred_check
          %p138 = pneg %p74
        $region14: #{tpu_custom_call.1} parent=11 // pred_check_branch
          %140 = sbr.rel (%p138) target = $region16
        $region15: #{tpu_custom_call.1} parent=11 // pred_region
          %142 = vsyncadd [#allocation5], 0
          %s144 = sshll.u32 %s1, 4
          %s145 = int_to_ptr.hbm [resolvable:$true] %s144
          %s146 = sshll.u32 [#allocation4], 4
          %s147 = int_to_ptr.vmem [resolvable:$true] %s146
          %149 = dma.hbm_to_vmem [thread:$0]  %s145, 64, %s147, [#allocation5]
        $region16: #{tpu_custom_call.1} parent=11 // pred_fallthru
          _
        // Predicated region
        $region17: #{tpu_custom_call.1} parent=11 // pred_check
          %p150 = pneg %p95
        $region18: #{tpu_custom_call.1} parent=11 // pred_check_branch
          %152 = sbr.rel (%p150) target = $region20
        $region19: #{tpu_custom_call.1} parent=11 // pred_region
          _
        $region20: #{tpu_custom_call.1} parent=11 // pred_fallthru
          _
      $region12: #{tpu_custom_call.1} parent=5 // pred_fallthru
        _
      %p153 = scmp.lt.s32.totalorder %s13, 2
      // Predicated region
      $region21: #{tpu_custom_call.1} parent=5 // pred_check
        %p154 = pneg %p153
      $region22: #{tpu_custom_call.1} parent=5 // pred_check_branch
        %156 = sbr.rel (%p154) target = $region24
      $region23: #{tpu_custom_call.1} parent=5 // pred_region
        // Predicated region
        $region25: #{tpu_custom_call.1} parent=23 // pred_check
          %p157 = pneg %p47
        $region26: #{tpu_custom_call.1} parent=23 // pred_check_branch
          %159 = sbr.rel (%p157) target = $region28
        $region27: #{tpu_custom_call.1} parent=23 // pred_region
          %s160 = sand.u32 %s37, 1
          %s161 = scalar_lea.sflag [#allocation3], %s160
          %s162 = sand.u32 %s37, 1
          %s163 = smul.addr %s162, 8
          %s164 = scalar_lea.vmem [#allocation2], %s163
          %s165 = smul.u32 2, %s21
          %167 = vsyncadd %s161, 0
          %s168 = smul.addr %s20, 2
          %s169 = sadd.s32 %s165, %s168
          %s170 = smul.addr %s169, 4
          %s171 = scalar_lea.hbm %s0, %s170
          %s173 = sshll.u32 %s171, 4
          %s174 = int_to_ptr.hbm [resolvable:$true] %s173
          %s175 = sshll.u32 %s164, 4
          %s176 = int_to_ptr.vmem [resolvable:$true] %s175
          %178 = dma.hbm_to_vmem [thread:$0]  %s174, 128, %s176, %s161
        $region28: #{tpu_custom_call.1} parent=23 // pred_fallthru
          _
      $region24: #{tpu_custom_call.1} parent=5 // pred_fallthru
        _
      %p179 = scmp.le.s32.totalorder 1, %s13
      %p180 = scmp.lt.s32.totalorder %s13, 3
      %p181 = pnand %p179, %p180
      %p182 = pneg %p181
      // Predicated region
      $region29: #{tpu_custom_call.1} parent=5 // pred_check
        _
      $region30: #{tpu_custom_call.1} parent=5 // pred_check_branch
        %184 = sbr.rel (%p181) target = $region32
      $region31: #{tpu_custom_call.1} parent=5 // pred_region
        %s185 = ssub.s32 %s13, 1
        %s186 = sand.u32 %s40, 1
        %s187 = scalar_lea.sflag [#allocation3], %s186
        %s188 = sand.u32 %s40, 1
        %s189 = smul.addr %s188, 8
        %s190 = scalar_lea.vmem [#allocation2], %s189
        // Predicated region
        $region33: #{tpu_custom_call.1} parent=31 // pred_check
          %p191 = pneg %p53
        $region34: #{tpu_custom_call.1} parent=31 // pred_check_branch
          %193 = sbr.rel (%p191) target = $region36
        $region35: #{tpu_custom_call.1} parent=31 // pred_region
          %195 = dma.done %s187, 128
        $region36: #{tpu_custom_call.1} parent=31 // pred_fallthru
          _
        // Predicated region
        $region37: #{tpu_custom_call.1} parent=31 // pred_check
          %p196 = pneg %p74
        $region38: #{tpu_custom_call.1} parent=31 // pred_check_branch
          %198 = sbr.rel (%p196) target = $region40
        $region39: #{tpu_custom_call.1} parent=31 // pred_region
          %200 = dma.done [#allocation5], 64
        $region40: #{tpu_custom_call.1} parent=31 // pred_fallthru
          _
        %s201 = sand.u32 %s40, 1
        %s202 = scalar_lea.sflag [#allocation3], %s201
        %s203 = sand.u32 %s40, 1
        %s204 = smul.addr %s203, 8
        %s205 = scalar_lea.vmem [#allocation2], %s204
        %p206 = pneg %p53
        %p207 = pneg %p50
        %p208 = pneg %p74
        %p209 = pneg %p71
        %p210 = pneg %p95
        %p211 = pneg %p92
        %p212 = pneg %p123
        %p213 = pneg %p120
        %s214 = smul.u32 32, %s23
        %p215 = scmp.lt.s32.totalorder %s22, 1
        %s216 = scalar_select %p215, %s22, 1
        %p217 = scmp.lt.s32.totalorder %s214, 31
        %s218 = scalar_select %p217, %s214, 31
        %s219 = smul.addr %s216, 32
        %s220 = sadd.s32 %s218, %s219
        %s221 = smul.addr %s220, 8
        %s222 = scalar_lea.vmem %s3, %s221
        %s223 = smul.u32 2, %s23
        %s224 = smul.u32 32, %s23
        %p225 = scmp.lt.s32.totalorder %s22, 1
        %s226 = scalar_select %p225, %s22, 1
        %p227 = scmp.lt.s32.totalorder %s224, 31
        %s228 = scalar_select %p227, %s224, 31
        %s229 = smul.addr %s226, 32
        %s230 = sadd.s32 %s228, %s229
        %s231 = smul.addr %s230, 8
        %s232 = scalar_lea.vmem %s3, %s231
        %s233 = smul.u32 32, %s23
        %v234 = vld [vmem:[%s190] sm:$0xff]
        %v235 = vld [vmem:[#allocation4] sm:$0xf]
        %v236 = vld [vmem:[%s2] sm:$0x1]
        %v238 = vperm.slane %v236, 0
        %241 = vst [vmem:[#allocation1] ss:$2 sm:$0xff] %v234
        %v242 = vld.sshfl [vmem:[#allocation1] sm:$0xff pattern:$0x75316420]
        %v243 = vld.sshfl [vmem:[#allocation1 + $0x8] sm:$0xff pattern:$0x75316420]
        %246 = vxpose.xlu0.b32.start [1/16] %v242, 128
        %247 = vxpose.xlu0.b32.cont [2/16] 0.0, 128
        %248 = vxpose.xlu0.b32.cont [3/16] 0.0, 128
        %249 = vxpose.xlu0.b32.cont [4/16] 0.0, 128
        %250 = vxpose.xlu0.b32.cont [5/16] 0.0, 128
        %251 = vxpose.xlu0.b32.cont [6/16] 0.0, 128
        %252 = vxpose.xlu0.b32.cont [7/16] 0.0, 128
        %253 = vxpose.xlu0.b32.cont [8/16] 0.0, 128
        %254 = vxpose.xlu0.b32.cont [9/16] 0.0, 128
        %255 = vxpose.xlu0.b32.cont [10/16] 0.0, 128
        %256 = vxpose.xlu0.b32.cont [11/16] 0.0, 128
        %257 = vxpose.xlu0.b32.cont [12/16] 0.0, 128
        %258 = vxpose.xlu0.b32.cont [13/16] 0.0, 128
        %259 = vxpose.xlu0.b32.cont [14/16] 0.0, 128
        %260 = vxpose.xlu0.b32.cont [15/16] 0.0, 128
        %261 = vxpose.xlu0.b32.end [16/16] 0.0, 128
        %v262 = vpop.trf.xlu0
        %v263 = vpop.trf.xlu0
        %v264 = vpop.trf.xlu0
        %v265 = vpop.trf.xlu0
        %v266 = vpop.trf.xlu0
        %v267 = vpop.trf.xlu0
        %v268 = vpop.trf.xlu0
        %v269 = vpop.trf.xlu0
        %v270 = vpop.trf.xlu0
        %v271 = vpop.trf.xlu0
        %v272 = vpop.trf.xlu0
        %v273 = vpop.trf.xlu0
        %v274 = vpop.trf.xlu0
        %v275 = vpop.trf.xlu0
        %v276 = vpop.trf.xlu0
        %v277 = vpop.trf.xlu0
        %278 = vxpose.xlu0.b32.start [1/16] %v243, 128
        %279 = vxpose.xlu0.b32.cont [2/16] 0.0, 128
        %280 = vxpose.xlu0.b32.cont [3/16] 0.0, 128
        %281 = vxpose.xlu0.b32.cont [4/16] 0.0, 128
        %282 = vxpose.xlu0.b32.cont [5/16] 0.0, 128
        %283 = vxpose.xlu0.b32.cont [6/16] 0.0, 128
        %284 = vxpose.xlu0.b32.cont [7/16] 0.0, 128
        %285 = vxpose.xlu0.b32.cont [8/16] 0.0, 128
        %286 = vxpose.xlu0.b32.cont [9/16] 0.0, 128
        %287 = vxpose.xlu0.b32.cont [10/16] 0.0, 128
        %288 = vxpose.xlu0.b32.cont [11/16] 0.0, 128
        %289 = vxpose.xlu0.b32.cont [12/16] 0.0, 128
        %290 = vxpose.xlu0.b32.cont [13/16] 0.0, 128
        %291 = vxpose.xlu0.b32.cont [14/16] 0.0, 128
        %292 = vxpose.xlu0.b32.cont [15/16] 0.0, 128
        %293 = vxpose.xlu0.b32.end [16/16] 0.0, 128
        %v294 = vpop.trf.xlu0
        %v295 = vpop.trf.xlu0
        %v296 = vpop.trf.xlu0
        %v297 = vpop.trf.xlu0
        %v298 = vpop.trf.xlu0
        %v299 = vpop.trf.xlu0
        %v300 = vpop.trf.xlu0
        %v301 = vpop.trf.xlu0
        %v302 = vpop.trf.xlu0
        %v303 = vpop.trf.xlu0
        %v304 = vpop.trf.xlu0
        %v305 = vpop.trf.xlu0
        %v306 = vpop.trf.xlu0
        %v307 = vpop.trf.xlu0
        %v308 = vpop.trf.xlu0
        %v309 = vpop.trf.xlu0
        %vm310 = vcmask 31744
        %v312 = vsel %vm310, %v262, 0
        %v315 = vsel %vm310, %v263, 0
        %v318 = vsel %vm310, %v264, 0
        %v321 = vsel %vm310, %v265, 0
        %v324 = vsel %vm310, %v266, 0
        %v327 = vsel %vm310, %v267, 0
        %v330 = vsel %vm310, %v268, 0
        %v333 = vsel %vm310, %v269, 0
        %v336 = vsel %vm310, %v270, 0
        %v339 = vsel %vm310, %v271, 0
        %v342 = vsel %vm310, %v272, 0
        %v345 = vsel %vm310, %v273, 0
        %v348 = vsel %vm310, %v274, 0
        %v351 = vsel %vm310, %v275, 0
        %v354 = vsel %vm310, %v276, 0
        %v357 = vsel %vm310, %v277, 0
        %v360 = vsel %vm310, %v294, 0
        %v363 = vsel %vm310, %v295, 0
        %v366 = vsel %vm310, %v296, 0
        %v369 = vsel %vm310, %v297, 0
        %v372 = vsel %vm310, %v298, 0
        %v375 = vsel %vm310, %v299, 0
        %v378 = vsel %vm310, %v300, 0
        %v381 = vsel %vm310, %v301, 0
        %v384 = vsel %vm310, %v302, 0
        %v387 = vsel %vm310, %v303, 0
        %v390 = vsel %vm310, %v304, 0
        %v393 = vsel %vm310, %v305, 0
        %v396 = vsel %vm310, %v306, 0
        %v399 = vsel %vm310, %v307, 0
        %v402 = vsel %vm310, %v308, 0
        %v405 = vsel %vm310, %v309, 0
        %vm407 = vcmask 1043456
        %v409 = vsel %vm407, %v235, 0
        %411 = vmatpush.msra.mxu0 0.0
        %412 = vmatpush.msra.mxu0 0.0
        %413 = vmatpush.msra.mxu0 0.0
        %414 = vmatpush.msra.mxu0 0.0
        %415 = vmatpush.msra.mxu0 0.0
        %416 = vmatpush.msra.mxu0 0.0
        %417 = vmatpush.msra.mxu0 0.0
        %418 = vmatpush.msra.mxu0 0.0
        %419 = vmatpush.msra.mxu0 0.0
        %420 = vmatpush.msra.mxu0 0.0
        %421 = vmatpush.msra.mxu0 0.0
        %422 = vmatpush.msra.mxu0 0.0
        %423 = vmatpush.msra.mxu0 0.0
        %424 = vmatpush.msra.mxu0 0.0
        %425 = vmatpush.msra.mxu0 0.0
        %426 = vmatpush.msra.mxu0 %v409
        %427 = vmatmul.f32.gmra.mxu0 %v312
        %v428 = vpop.f32.mrf.mxu0
        %v429 = vadd.f32 %v238, %v428
        %430 = vmatmul.f32.gmra.mxu0 %v315
        %v431 = vpop.f32.mrf.mxu0
        %v432 = vadd.f32 %v238, %v431
        %433 = vmatmul.f32.gmra.mxu0 %v318
        %v434 = vpop.f32.mrf.mxu0
        %v435 = vadd.f32 %v238, %v434
        %436 = vmatmul.f32.gmra.mxu0 %v321
        %v437 = vpop.f32.mrf.mxu0
        %v438 = vadd.f32 %v238, %v437
        %439 = vmatmul.f32.gmra.mxu0 %v324
        %v440 = vpop.f32.mrf.mxu0
        %v441 = vadd.f32 %v238, %v440
        %442 = vmatmul.f32.gmra.mxu0 %v327
        %v443 = vpop.f32.mrf.mxu0
        %v444 = vadd.f32 %v238, %v443
        %445 = vmatmul.f32.gmra.mxu0 %v330
        %v446 = vpop.f32.mrf.mxu0
        %v447 = vadd.f32 %v238, %v446
        %448 = vmatmul.f32.gmra.mxu0 %v333
        %v449 = vpop.f32.mrf.mxu0
        %v450 = vadd.f32 %v238, %v449
        %451 = vmatmul.f32.gmra.mxu0 %v336
        %v452 = vpop.f32.mrf.mxu0
        %v453 = vadd.f32 %v238, %v452
        %454 = vmatmul.f32.gmra.mxu0 %v339
        %v455 = vpop.f32.mrf.mxu0
        %v456 = vadd.f32 %v238, %v455
        %457 = vmatmul.f32.gmra.mxu0 %v342
        %v458 = vpop.f32.mrf.mxu0
        %v459 = vadd.f32 %v238, %v458
        %460 = vmatmul.f32.gmra.mxu0 %v345
        %v461 = vpop.f32.mrf.mxu0
        %v462 = vadd.f32 %v238, %v461
        %463 = vmatmul.f32.gmra.mxu0 %v348
        %v464 = vpop.f32.mrf.mxu0
        %v465 = vadd.f32 %v238, %v464
        %466 = vmatmul.f32.gmra.mxu0 %v351
        %v467 = vpop.f32.mrf.mxu0
        %v468 = vadd.f32 %v238, %v467
        %469 = vmatmul.f32.gmra.mxu0 %v354
        %v470 = vpop.f32.mrf.mxu0
        %v471 = vadd.f32 %v238, %v470
        %472 = vmatmul.f32.gmra.mxu0 %v357
        %v473 = vpop.f32.mrf.mxu0
        %v474 = vadd.f32 %v238, %v473
        %475 = vmatmul.f32.gmra.mxu0 %v360
        %v476 = vpop.f32.mrf.mxu0
        %v477 = vadd.f32 %v238, %v476
        %478 = vmatmul.f32.gmra.mxu0 %v363
        %v479 = vpop.f32.mrf.mxu0
        %v480 = vadd.f32 %v238, %v479
        %481 = vmatmul.f32.gmra.mxu0 %v366
        %v482 = vpop.f32.mrf.mxu0
        %v483 = vadd.f32 %v238, %v482
        %484 = vmatmul.f32.gmra.mxu0 %v369
        %v485 = vpop.f32.mrf.mxu0
        %v486 = vadd.f32 %v238, %v485
        %487 = vmatmul.f32.gmra.mxu0 %v372
        %v488 = vpop.f32.mrf.mxu0
        %v489 = vadd.f32 %v238, %v488
        %490 = vmatmul.f32.gmra.mxu0 %v375
        %v491 = vpop.f32.mrf.mxu0
        %v492 = vadd.f32 %v238, %v491
        %493 = vmatmul.f32.gmra.mxu0 %v378
        %v494 = vpop.f32.mrf.mxu0
        %v495 = vadd.f32 %v238, %v494
        %496 = vmatmul.f32.gmra.mxu0 %v381
        %v497 = vpop.f32.mrf.mxu0
        %v498 = vadd.f32 %v238, %v497
        %499 = vmatmul.f32.gmra.mxu0 %v384
        %v500 = vpop.f32.mrf.mxu0
        %v501 = vadd.f32 %v238, %v500
        %502 = vmatmul.f32.gmra.mxu0 %v387
        %v503 = vpop.f32.mrf.mxu0
        %v504 = vadd.f32 %v238, %v503
        %505 = vmatmul.f32.gmra.mxu0 %v390
        %v506 = vpop.f32.mrf.mxu0
        %v507 = vadd.f32 %v238, %v506
        %508 = vmatmul.f32.gmra.mxu0 %v393
        %v509 = vpop.f32.mrf.mxu0
        %v510 = vadd.f32 %v238, %v509
        %511 = vmatmul.f32.gmra.mxu0 %v396
        %v512 = vpop.f32.mrf.mxu0
        %v513 = vadd.f32 %v238, %v512
        %514 = vmatmul.f32.gmra.mxu0 %v399
        %v515 = vpop.f32.mrf.mxu0
        %v516 = vadd.f32 %v238, %v515
        %517 = vmatmul.f32.gmra.mxu0 %v402
        %v518 = vpop.f32.mrf.mxu0
        %v519 = vadd.f32 %v238, %v518
        %520 = vmatmul.f32.gmra.mxu0 %v405
        %v521 = vpop.f32.mrf.mxu0
        %v522 = vadd.f32 %v238, %v521
        %523 = vdwg.mxu0
        %vm524 = vcmask 261120
        %525 = vst.msk [vmem:[%s232] sm:$0xff] %vm524, %v429
        %526 = vst.msk [vmem:[%s232 + $0x8] sm:$0xff] %vm524, %v432
        %527 = vst.msk [vmem:[%s232 + $0x10] sm:$0xff] %vm524, %v435
        %528 = vst.msk [vmem:[%s232 + $0x18] sm:$0xff] %vm524, %v438
        %529 = vst.msk [vmem:[%s232 + $0x20] sm:$0xff] %vm524, %v441
        %530 = vst.msk [vmem:[%s232 + $0x28] sm:$0xff] %vm524, %v444
        %531 = vst.msk [vmem:[%s232 + $0x30] sm:$0xff] %vm524, %v447
        %532 = vst.msk [vmem:[%s232 + $0x38] sm:$0xff] %vm524, %v450
        %533 = vst.msk [vmem:[%s232 + $0x40] sm:$0xff] %vm524, %v453
        %534 = vst.msk [vmem:[%s232 + $0x48] sm:$0xff] %vm524, %v456
        %535 = vst.msk [vmem:[%s232 + $0x50] sm:$0xff] %vm524, %v459
        %536 = vst.msk [vmem:[%s232 + $0x58] sm:$0xff] %vm524, %v462
        %537 = vst.msk [vmem:[%s232 + $0x60] sm:$0xff] %vm524, %v465
        %538 = vst.msk [vmem:[%s232 + $0x68] sm:$0xff] %vm524, %v468
        %539 = vst.msk [vmem:[%s232 + $0x70] sm:$0xff] %vm524, %v471
        %540 = vst.msk [vmem:[%s232 + $0x78] sm:$0xff] %vm524, %v474
        %541 = vst.msk [vmem:[%s232 + $0x80] sm:$0xff] %vm524, %v477
        %542 = vst.msk [vmem:[%s232 + $0x88] sm:$0xff] %vm524, %v480
        %543 = vst.msk [vmem:[%s232 + $0x90] sm:$0xff] %vm524, %v483
        %544 = vst.msk [vmem:[%s232 + $0x98] sm:$0xff] %vm524, %v486
        %545 = vst.msk [vmem:[%s232 + $0xa0] sm:$0xff] %vm524, %v489
        %546 = vst.msk [vmem:[%s232 + $0xa8] sm:$0xff] %vm524, %v492
        %547 = vst.msk [vmem:[%s232 + $0xb0] sm:$0xff] %vm524, %v495
        %548 = vst.msk [vmem:[%s232 + $0xb8] sm:$0xff] %vm524, %v498
        %549 = vst.msk [vmem:[%s232 + $0xc0] sm:$0xff] %vm524, %v501
        %550 = vst.msk [vmem:[%s232 + $0xc8] sm:$0xff] %vm524, %v504
        %551 = vst.msk [vmem:[%s232 + $0xd0] sm:$0xff] %vm524, %v507
        %552 = vst.msk [vmem:[%s232 + $0xd8] sm:$0xff] %vm524, %v510
        %553 = vst.msk [vmem:[%s232 + $0xe0] sm:$0xff] %vm524, %v513
        %554 = vst.msk [vmem:[%s232 + $0xe8] sm:$0xff] %vm524, %v516
        %555 = vst.msk [vmem:[%s232 + $0xf0] sm:$0xff] %vm524, %v519
        %556 = vst.msk [vmem:[%s232 + $0xf8] sm:$0xff] %vm524, %v522
        %s557 = smul.u32 32, %s23
        %p558 = scmp.lt.s32.totalorder %s22, 1
        %s559 = scalar_select %p558, %s22, 1
        %p560 = scmp.lt.s32.totalorder %s557, 31
        %s561 = scalar_select %p560, %s557, 31
        %s562 = smul.addr %s559, 32
        %s563 = sadd.s32 %s561, %s562
        %s564 = smul.addr %s563, 8
        %s565 = scalar_lea.vmem %s3, %s564
        // Predicated region
        $region41: #{tpu_custom_call.1} parent=31 // pred_check
          %p566 = pneg %p120
        $region42: #{tpu_custom_call.1} parent=31 // pred_check_branch
          %568 = sbr.rel (%p566) target = $region44
        $region43: #{tpu_custom_call.1} parent=31 // pred_region
          %s569 = smul.u32 32, %s23
        $region44: #{tpu_custom_call.1} parent=31 // pred_fallthru
          _
      $region32: #{tpu_custom_call.1} parent=5 // pred_fallthru
        _
      %p570 = scmp.le.s32.totalorder 2, %s13
      // Predicated region
      $region45: #{tpu_custom_call.1} parent=5 // pred_check
        %p571 = pneg %p570
      $region46: #{tpu_custom_call.1} parent=5 // pred_check_branch
        %573 = sbr.rel (%p571) target = $region48
      $region47: #{tpu_custom_call.1} parent=5 // pred_region
        %s574 = ssub.s32 %s13, 2
        // Predicated region
        $region49: #{tpu_custom_call.1} parent=47 // pred_check
          %p575 = pneg %p126
        $region50: #{tpu_custom_call.1} parent=47 // pred_check_branch
          %577 = sbr.rel (%p575) target = $region52
        $region51: #{tpu_custom_call.1} parent=47 // pred_region
          %s578 = smul.u32 32, %s25
          %p579 = scmp.lt.s32.totalorder %s24, 1
          %s580 = scalar_select %p579, %s24, 1
          %p581 = scmp.lt.s32.totalorder %s578, 31
          %s582 = scalar_select %p581, %s578, 31
          %s583 = smul.addr %s580, 32
          %s584 = sadd.s32 %s582, %s583
          %s585 = smul.addr %s584, 8
          %s586 = scalar_lea.vmem %s3, %s585
        $region52: #{tpu_custom_call.1} parent=47 // pred_fallthru
          _
      $region48: #{tpu_custom_call.1} parent=5 // pred_fallthru
        _
    $region6: #{tpu_custom_call.1} parent=1 // loop_footer
      %s17 = sadd.s32 1, %s13
    $region7: #{tpu_custom_call.1} parent=1 // loop_footer_branch
      %12 = sbr.rel target = $region3
    $region8: #{tpu_custom_call.1} parent=1 // loop_exit
      _
    %587 = vsyncpa [#allocation3], 1
    %s588 = scalar_lea.sflag [#allocation3], 1
    %589 = vsyncpa %s588, 1
    %590 = vsyncpa [#allocation5], 1

</llo_original>
